<compile_context>
chip_gen: v7x
topology: tpu7x:2x2x1
jax: 0.10.0
libtpu: 0.0.40
codegen_flags: <defaults>
</compile_context>

<pallas_src>
import jax
import jax.numpy as jnp
from jax.experimental import pallas as pl
from jax.experimental.pallas import tpu as pltpu

# ---- model dimensions (small, consistent with the PyTorch module) -----------
NR = 32          # nfeatures_rna
NP = 16          # nfeatures_pro
HR = 32          # hidden_rna
HP = 16          # hidden_pro
ZD = 16          # z_dim
NF = NR + NP     # input / reconstructed feature width (48)
HH = HR + HP     # concatenated hidden width (48)

B = 256          # batch (multiple of TB so the grid divides evenly)
TB = 128         # batch-tile rows per grid step

BN_EPS = 1e-5          # nn.BatchNorm1d default
LEAKY_SLOPE = 0.01     # nn.LeakyReLU default


def _leaky(x):
    return jnp.where(x > 0, x, LEAKY_SLOPE * x)


# -----------------------------------------------------------------------------
# Kernel: full CiteAutoencoder forward on one [TB, NF] batch tile.
#   h = leaky(x @ W1)            W1 = blockdiag(w_rna, w_pro)
#   z = leaky(h @ W2 + b2)       branch BNs folded into W2 / b2
#   d = leaky(z @ W3 + b3)       z BN folded into W3 / b3
#   y =        d @ W4 + b4       hidden BN + output bias folded into W4 / b4
# -----------------------------------------------------------------------------
def cite_ae_kernel(x_ref, w1_ref, w2_ref, w3_ref, w4_ref, bias_ref, out_ref):
    x = x_ref[...]                      # [TB, NF]
    bias = bias_ref[...]                # [8, 128] packed bias slab
    b2 = bias[0:1, :ZD]                 # encoder-head bias   (folded BN)
    b3 = bias[1:2, :HH]                 # decoder-hidden bias (folded BN)
    b4 = bias[2:3, :NF]                 # output bias         (folded BN + lin bias)

    h = _leaky(jnp.dot(x, w1_ref[...], preferred_element_type=jnp.float32))
    z = _leaky(jnp.dot(h, w2_ref[...], preferred_element_type=jnp.float32) + b2)
    d = _leaky(jnp.dot(z, w3_ref[...], preferred_element_type=jnp.float32) + b3)
    y = jnp.dot(d, w4_ref[...], preferred_element_type=jnp.float32) + b4

    out_ref[...] = y.astype(out_ref.dtype)


def cite_autoencoder_forward(x, folded):
    w1, w2, w3, w4, bias_slab = folded
    batch = x.shape[0]
    assert batch % TB == 0, "pad batch to a multiple of TB"
    resident = lambda i: (0, 0)         # weights/bias stay resident across steps
    return pl.pallas_call(
        cite_ae_kernel,
        out_shape=jax.ShapeDtypeStruct((batch, NF), jnp.float32),
        grid=(batch // TB,),
        in_specs=[
            pl.BlockSpec((TB, NF), lambda i: (i, 0)),   # x tile
            pl.BlockSpec((NF, HH), resident),           # W1 block-diagonal
            pl.BlockSpec((HH, ZD), resident),           # W2 (BN-folded)
            pl.BlockSpec((ZD, HH), resident),           # W3 (BN-folded)
            pl.BlockSpec((HH, NF), resident),           # W4 (BN-folded)
            pl.BlockSpec((8, 128), resident),           # packed bias slab
        ],
        out_specs=pl.BlockSpec((TB, NF), lambda i: (i, 0)),
        compiler_params=pltpu.CompilerParams(dimension_semantics=("parallel",)),
    )(x, w1, w2, w3, w4, bias_slab)


# -----------------------------------------------------------------------------
# Parameter construction (raw module params) + one-time constant folding
# -----------------------------------------------------------------------------
def init_raw_params(key):
    """Deterministic synthetic parameters, shapes matching the PyTorch module.

    Linear weights are stored pre-transposed as [n_in, n_out]."""
    ks = jax.random.split(key, 10)
    f32 = jnp.float32

    def bn(k, h):
        kg, kb, km, kv = jax.random.split(k, 4)
        gamma = 1.0 + 0.1 * jax.random.normal(kg, (h,), f32)
        beta = 0.1 * jax.random.normal(kb, (h,), f32)
        mean = 0.1 * jax.random.normal(km, (h,), f32)
        var = jnp.abs(jax.random.normal(kv, (h,), f32)) + 0.5
        return gamma, beta, mean, var

    return dict(
        w_rna=jax.random.normal(ks[0], (NR, HR), f32) * 0.1,   # encoder_rna Linear (bias=False)
        w_pro=jax.random.normal(ks[1], (NP, HP), f32) * 0.1,   # encoder_protein Linear (bias=False)
        w_z=jax.random.normal(ks[2], (HH, ZD), f32) * 0.1,     # encoder head Linear (bias=False)
        w_d1=jax.random.normal(ks[3], (ZD, HH), f32) * 0.1,    # decoder hidden Linear (bias=False)
        w_d2=jax.random.normal(ks[4], (HH, NF), f32) * 0.1,    # decoder output Linear (bias=True)
        b_d2=0.1 * jax.random.normal(ks[5], (NF,), f32),
        bn_rna=bn(ks[6], HR),
        bn_pro=bn(ks[7], HP),
        bn_z=bn(ks[8], ZD),
        bn_d1=bn(ks[9], HH),
    )


def _bn_scale_shift(bn_params):
    gamma, beta, mean, var = bn_params
    scale = gamma * jax.lax.rsqrt(var + BN_EPS)
    shift = beta - mean * scale
    return scale, shift


def fold_params(raw):
    """One-time preprocessing: block-diag merge + fold all eval-mode BNs."""
    s_r, t_r = _bn_scale_shift(raw["bn_rna"])
    s_p, t_p = _bn_scale_shift(raw["bn_pro"])
    s_z, t_z = _bn_scale_shift(raw["bn_z"])
    s_d, t_d = _bn_scale_shift(raw["bn_d1"])

    # block-diagonal branch weight: x @ w1 == concat([x_rna @ w_rna, x_pro @ w_pro])
    w1 = jnp.zeros((NF, HH), jnp.float32)
    w1 = w1.at[:NR, :HR].set(raw["w_rna"])
    w1 = w1.at[NR:, HR:].set(raw["w_pro"])

    s_h = jnp.concatenate([s_r, s_p])
    t_h = jnp.concatenate([t_r, t_p])

    # fold branch BN affine into the encoder-head linear
    w2 = s_h[:, None] * raw["w_z"]
    b2 = t_h @ raw["w_z"]
    # fold z BN affine into the decoder-hidden linear
    w3 = s_z[:, None] * raw["w_d1"]
    b3 = t_z @ raw["w_d1"]
    # fold decoder-hidden BN affine into the output linear (which keeps its own bias)
    w4 = s_d[:, None] * raw["w_d2"]
    b4 = t_d @ raw["w_d2"] + raw["b_d2"]

    bias_slab = jnp.zeros((8, 128), jnp.float32)
    bias_slab = bias_slab.at[0, :ZD].set(b2)
    bias_slab = bias_slab.at[1, :HH].set(b3)
    bias_slab = bias_slab.at[2, :NF].set(b4)
    return w1, w2, w3, w4, bias_slab


# -----------------------------------------------------------------------------
# Pure-JAX reference implementing the original module (eval mode), raw params
# -----------------------------------------------------------------------------
def reference_forward(x, raw):
    def bn(h, p):
        gamma, beta, mean, var = p
        return (h - mean) * jax.lax.rsqrt(var + BN_EPS) * gamma + beta

    hi = jax.lax.Precision.HIGHEST
    h_r = bn(_leaky(jnp.dot(x[:, :NR], raw["w_rna"], precision=hi)), raw["bn_rna"])
    h_p = bn(_leaky(jnp.dot(x[:, NR:], raw["w_pro"], precision=hi)), raw["bn_pro"])
    h = jnp.concatenate([h_r, h_p], axis=1)          # Dropout(p=0.1) = identity at eval
    z = bn(_leaky(jnp.dot(h, raw["w_z"], precision=hi)), raw["bn_z"])
    d = bn(_leaky(jnp.dot(z, raw["w_d1"], precision=hi)), raw["bn_d1"])
    return jnp.dot(d, raw["w_d2"], precision=hi) + raw["b_d2"]


if __name__ == "__main__":
    key = jax.random.PRNGKey(0)
    kx, kp = jax.random.split(key)
    x = jax.random.normal(kx, (B, NF), jnp.float32)

    raw = init_raw_params(kp)
    folded = fold_params(raw)   # one-time constant preprocessing, not per-call work

    # TODO(synk): training-mode Dropout(p=0.1) and BatchNorm batch-statistic
    # updates are not implemented; this kernel is the eval/inference forward.
    out = jax.block_until_ready(cite_autoencoder_forward(x, folded))

    ref = reference_forward(x, raw)
    assert out.shape == (B, NF)
    # tolerance covers the f32 re-association introduced by BN folding
    assert jnp.allclose(out, ref, atol=1e-3, rtol=1e-3), float(jnp.max(jnp.abs(out - ref)))
    print("KERNEL_OK")
</pallas_src>

<mosaic_0001>
module attributes {stable_mosaic.version = 11 : i64} {
  func.func @cite_ae_kernel(%arg0: i32, %arg1: memref<128x48xf32, #tpu.memory_space<vmem>>, %arg2: memref<48x48xf32, #tpu.memory_space<vmem>>, %arg3: memref<48x16xf32, #tpu.memory_space<vmem>>, %arg4: memref<16x48xf32, #tpu.memory_space<vmem>>, %arg5: memref<48x48xf32, #tpu.memory_space<vmem>>, %arg6: memref<8x128xf32, #tpu.memory_space<vmem>>, %arg7: memref<128x48xf32, #tpu.memory_space<vmem>>) attributes {dimension_semantics = [#tpu.dimension_semantics<parallel>], iteration_bounds = array<i64: 2>, scalar_prefetch = 0 : i64, scratch_operands = 0 : i64, tpu.core_type = #tpu.core_type<tc>, window_params = [{transform_indices = @transform_0, window_bounds = array<i64: 128, 48>}, {pipeline_mode = #tpu.pipeline_mode<synchronous>, transform_indices = @transform_1, window_bounds = array<i64: 48, 48>}, {pipeline_mode = #tpu.pipeline_mode<synchronous>, transform_indices = @transform_2, window_bounds = array<i64: 48, 16>}, {pipeline_mode = #tpu.pipeline_mode<synchronous>, transform_indices = @transform_3, window_bounds = array<i64: 16, 48>}, {pipeline_mode = #tpu.pipeline_mode<synchronous>, transform_indices = @transform_4, window_bounds = array<i64: 48, 48>}, {pipeline_mode = #tpu.pipeline_mode<synchronous>, transform_indices = @transform_5, window_bounds = array<i64: 8, 128>}, {transform_indices = @transform_6, window_bounds = array<i64: 128, 48>}]} {
    %c0 = arith.constant 0 : index
    %c0_0 = arith.constant 0 : index
    %0 = vector.load %arg1[%c0, %c0_0] : memref<128x48xf32, #tpu.memory_space<vmem>>, vector<128x48xf32>
    %c0_1 = arith.constant 0 : index
    %c0_2 = arith.constant 0 : index
    %1 = vector.load %arg6[%c0_1, %c0_2] : memref<8x128xf32, #tpu.memory_space<vmem>>, vector<8x128xf32>
    %2 = vector.extract_strided_slice %1 {offsets = [0, 0], sizes = [1, 16], strides = [1, 1]} : vector<8x128xf32> to vector<1x16xf32>
    %3 = vector.extract_strided_slice %1 {offsets = [1, 0], sizes = [1, 48], strides = [1, 1]} : vector<8x128xf32> to vector<1x48xf32>
    %4 = vector.extract_strided_slice %1 {offsets = [2, 0], sizes = [1, 48], strides = [1, 1]} : vector<8x128xf32> to vector<1x48xf32>
    %c0_3 = arith.constant 0 : index
    %c0_4 = arith.constant 0 : index
    %5 = vector.load %arg2[%c0_3, %c0_4] : memref<48x48xf32, #tpu.memory_space<vmem>>, vector<48x48xf32>
    %cst = arith.constant dense<0.000000e+00> : vector<128x48xf32>
    %6 = tpu.matmul %0, %5, %cst {dimension_numbers = #tpu.dot_dimension_numbers<[1], [0], [0], [1], [0, 0, 1, 1], [], []>} : vector<128x48xf32>, vector<48x48xf32>, vector<128x48xf32> -> vector<128x48xf32>
    %cst_5 = arith.constant 0.000000e+00 : f32
    %7 = vector.broadcast %cst_5 : f32 to vector<128x48xf32>
    %8 = arith.cmpf ogt, %6, %7 : vector<128x48xf32>
    %cst_6 = arith.constant 0.00999999977 : f32
    %9 = vector.broadcast %cst_6 : f32 to vector<128x48xf32>
    %10 = arith.mulf %9, %6 : vector<128x48xf32>
    %11 = arith.select %8, %6, %10 : vector<128x48xi1>, vector<128x48xf32>
    %c0_7 = arith.constant 0 : index
    %c0_8 = arith.constant 0 : index
    %12 = vector.load %arg3[%c0_7, %c0_8] : memref<48x16xf32, #tpu.memory_space<vmem>>, vector<48x16xf32>
    %cst_9 = arith.constant dense<0.000000e+00> : vector<128x16xf32>
    %13 = tpu.matmul %11, %12, %cst_9 {dimension_numbers = #tpu.dot_dimension_numbers<[1], [0], [0], [1], [0, 0, 1, 1], [], []>} : vector<128x48xf32>, vector<48x16xf32>, vector<128x16xf32> -> vector<128x16xf32>
    %14 = vector.broadcast %2 : vector<1x16xf32> to vector<128x16xf32>
    %15 = arith.addf %13, %14 : vector<128x16xf32>
    %cst_10 = arith.constant 0.000000e+00 : f32
    %16 = vector.broadcast %cst_10 : f32 to vector<128x16xf32>
    %17 = arith.cmpf ogt, %15, %16 : vector<128x16xf32>
    %cst_11 = arith.constant 0.00999999977 : f32
    %18 = vector.broadcast %cst_11 : f32 to vector<128x16xf32>
    %19 = arith.mulf %18, %15 : vector<128x16xf32>
    %20 = arith.select %17, %15, %19 : vector<128x16xi1>, vector<128x16xf32>
    %c0_12 = arith.constant 0 : index
    %c0_13 = arith.constant 0 : index
    %21 = vector.load %arg4[%c0_12, %c0_13] : memref<16x48xf32, #tpu.memory_space<vmem>>, vector<16x48xf32>
    %cst_14 = arith.constant dense<0.000000e+00> : vector<128x48xf32>
    %22 = tpu.matmul %20, %21, %cst_14 {dimension_numbers = #tpu.dot_dimension_numbers<[1], [0], [0], [1], [0, 0, 1, 1], [], []>} : vector<128x16xf32>, vector<16x48xf32>, vector<128x48xf32> -> vector<128x48xf32>
    %23 = vector.broadcast %3 : vector<1x48xf32> to vector<128x48xf32>
    %24 = arith.addf %22, %23 : vector<128x48xf32>
    %cst_15 = arith.constant 0.000000e+00 : f32
    %25 = vector.broadcast %cst_15 : f32 to vector<128x48xf32>
    %26 = arith.cmpf ogt, %24, %25 : vector<128x48xf32>
    %cst_16 = arith.constant 0.00999999977 : f32
    %27 = vector.broadcast %cst_16 : f32 to vector<128x48xf32>
    %28 = arith.mulf %27, %24 : vector<128x48xf32>
    %29 = arith.select %26, %24, %28 : vector<128x48xi1>, vector<128x48xf32>
    %c0_17 = arith.constant 0 : index
    %c0_18 = arith.constant 0 : index
    %30 = vector.load %arg5[%c0_17, %c0_18] : memref<48x48xf32, #tpu.memory_space<vmem>>, vector<48x48xf32>
    %cst_19 = arith.constant dense<0.000000e+00> : vector<128x48xf32>
    %31 = tpu.matmul %29, %30, %cst_19 {dimension_numbers = #tpu.dot_dimension_numbers<[1], [0], [0], [1], [0, 0, 1, 1], [], []>} : vector<128x48xf32>, vector<48x48xf32>, vector<128x48xf32> -> vector<128x48xf32>
    %32 = vector.broadcast %4 : vector<1x48xf32> to vector<128x48xf32>
    %33 = arith.addf %31, %32 : vector<128x48xf32>
    %c0_20 = arith.constant 0 : index
    %c0_21 = arith.constant 0 : index
    %34 = vector.load %arg7[%c0_20, %c0_21] : memref<128x48xf32, #tpu.memory_space<vmem>>, vector<128x48xf32>
    tpu.vector_store %arg7[%c0_20, %c0_21], %33 {strides = array<i32>} : memref<128x48xf32, #tpu.memory_space<vmem>>, vector<128x48xf32>,
    return
  }
  func.func @transform_0(%arg0: i32) -> (i32, i32) {
    %c0_i32 = arith.constant 0 : i32
    %c0_i32_0 = arith.constant 0 : i32
    return %arg0, %c0_i32 : i32, i32
  }
  func.func @transform_1(%arg0: i32) -> (i32, i32) {
    %c0_i32 = arith.constant 0 : i32
    %c0_i32_0 = arith.constant 0 : i32
    %c0_i32_1 = arith.constant 0 : i32
    return %c0_i32, %c0_i32_0 : i32, i32
  }
  func.func @transform_2(%arg0: i32) -> (i32, i32) {
    %c0_i32 = arith.constant 0 : i32
    %c0_i32_0 = arith.constant 0 : i32
    %c0_i32_1 = arith.constant 0 : i32
    return %c0_i32, %c0_i32_0 : i32, i32
  }
  func.func @transform_3(%arg0: i32) -> (i32, i32) {
    %c0_i32 = arith.constant 0 : i32
    %c0_i32_0 = arith.constant 0 : i32
    %c0_i32_1 = arith.constant 0 : i32
    return %c0_i32, %c0_i32_0 : i32, i32
  }
  func.func @transform_4(%arg0: i32) -> (i32, i32) {
    %c0_i32 = arith.constant 0 : i32
    %c0_i32_0 = arith.constant 0 : i32
    %c0_i32_1 = arith.constant 0 : i32
    return %c0_i32, %c0_i32_0 : i32, i32
  }
  func.func @transform_5(%arg0: i32) -> (i32, i32) {
    %c0_i32 = arith.constant 0 : i32
    %c0_i32_0 = arith.constant 0 : i32
    %c0_i32_1 = arith.constant 0 : i32
    return %c0_i32, %c0_i32_0 : i32, i32
  }
  func.func @transform_6(%arg0: i32) -> (i32, i32) {
    %c0_i32 = arith.constant 0 : i32
    %c0_i32_0 = arith.constant 0 : i32
    return %arg0, %c0_i32 : i32, i32
  }
}

</mosaic_0001>

<llo_original>
// kernel: tpu_custom_call.1
$region0: #{tpu_custom_call.1}
  #allocation0 [shape = 'u32[]', space=smem, size = 0x4, offset = 0x4, fixed_abs, tag = 'smem constant byte address 0x4 - core index']
  #allocation1 [shape = 'u32[144,128]{1,0:T(1,128)}', space=vmem, size = 0x12000, scoped, tag = 'internal scratch']
  %s0 = inlined_call_operand.vmem [shape: f32[256,48], index: 0, kind: input, shape index: {}]
  %s1 = inlined_call_operand.vmem [shape: f32[48,48], index: 1, kind: input, shape index: {}]
  %s2 = inlined_call_operand.vmem [shape: f32[48,16], index: 2, kind: input, shape index: {}]
  %s3 = inlined_call_operand.vmem [shape: f32[16,48], index: 3, kind: input, shape index: {}]
  %s4 = inlined_call_operand.vmem [shape: f32[48,48], index: 4, kind: input, shape index: {}]
  %s5 = inlined_call_operand.vmem [shape: f32[8,128], index: 5, kind: input, shape index: {}]
  %s6 = inlined_call_operand.vmem [shape: f32[256,48], index: 6, kind: output, shape index: {}]
  %s7 = sld [smem:[#allocation0]]
  $region57: #{tpu_custom_call.1} parent=0
    _
  %s9 = ssub.s32 1, %s7
  %s10 = scalar_select 0, %s9, %s7
  loop: start=0, step=1, limit=4
  $region2: #{tpu_custom_call.1} parent=0 // loop_pre_header
    _
  $region3: #{tpu_custom_call.1} parent=0 // loop_header
    %s12 = sphi 0, %s16
    %p13 = scmp.ge.s32.totalorder %s12, 4
    %s22 = sphi 0, %s24
    %s25 = sphi 0, %s22
    %s26 = sphi 0, %s25
    %s42 = sphi 0, %s26
    %s46 = sphi 0, %s46
    %s48 = sphi 0, %s46
    %s49 = sphi 0, %s48
    %s63 = sphi 0, %s49
    %s67 = sphi 0, %s67
    %s69 = sphi 0, %s67
    %s70 = sphi 0, %s69
    %s84 = sphi 0, %s70
    %s88 = sphi 0, %s88
    %s90 = sphi 0, %s88
    %s91 = sphi 0, %s90
    %s105 = sphi 0, %s91
    %s109 = sphi 0, %s109
    %s111 = sphi 0, %s109
    %s112 = sphi 0, %s111
    %s126 = sphi 0, %s112
    %s130 = sphi 0, %s130
    %s132 = sphi 0, %s130
    %s133 = sphi 0, %s132
    %s147 = sphi 0, %s133
    %s153 = sphi 0, %s155
    %s156 = sphi 0, %s153
    %s157 = sphi 0, %s156
    %s173 = sphi 0, %s157
  $region4: #{tpu_custom_call.1} parent=0 // loop_header_branch
    %15 = sbr.rel (%p13) target = $region8
  $region5: #{tpu_custom_call.1} parent=0 // loop_body
    %s17 = ssub.s32 %s12, 1
    %s18 = ssub.s32 %s12, 2
    %s19 = sadd.s32 %s12, 1
    %s20 = ssub.s32 %s12, %s19
    %p21 = scmp.eq.s32.totalorder %s20, 0
    %s23 = sadd.s32 %s22, 1
    %s24 = scalar_select %p21, %s22, %s23
    %p27 = pneg %p21
    %p28 = scmp.eq.s32.totalorder %s12, 1
    %p29 = por %p27, %p28
    %p30 = scmp.ne.s32.totalorder %s22, %s25
    %p31 = scmp.eq.s32.totalorder %s12, 0
    %p32 = por %p30, %p31
    %p33 = scmp.ne.s32.totalorder %s22, %s25
    %p34 = scmp.eq.s32.totalorder %s17, 1
    %p35 = por %p33, %p34
    %p36 = scmp.ne.s32.totalorder %s25, %s26
    %p37 = scmp.eq.s32.totalorder %s17, 0
    %p38 = por %p36, %p37
    %p39 = scmp.ne.s32.totalorder %s25, %s26
    %p40 = scmp.eq.s32.totalorder %s18, 1
    %p41 = por %p39, %p40
    %p43 = scmp.ne.s32.totalorder %s26, %s42
    %p44 = scmp.eq.s32.totalorder %s18, 0
    %p45 = por %p43, %p44
    %s47 = sadd.s32 %s46, 1
    %p50 = scmp.eq.s32.totalorder %s12, 1
    %p51 = scmp.ne.s32.totalorder %s46, %s48
    %p52 = scmp.eq.s32.totalorder %s12, 0
    %p53 = por %p51, %p52
    %p54 = scmp.ne.s32.totalorder %s46, %s48
    %p55 = scmp.eq.s32.totalorder %s17, 1
    %p56 = por %p54, %p55
    %p57 = scmp.ne.s32.totalorder %s48, %s49
    %p58 = scmp.eq.s32.totalorder %s17, 0
    %p59 = por %p57, %p58
    %p60 = scmp.ne.s32.totalorder %s48, %s49
    %p61 = scmp.eq.s32.totalorder %s18, 1
    %p62 = por %p60, %p61
    %p64 = scmp.ne.s32.totalorder %s49, %s63
    %p65 = scmp.eq.s32.totalorder %s18, 0
    %p66 = por %p64, %p65
    %s68 = sadd.s32 %s67, 1
    %p71 = scmp.eq.s32.totalorder %s12, 1
    %p72 = scmp.ne.s32.totalorder %s67, %s69
    %p73 = scmp.eq.s32.totalorder %s12, 0
    %p74 = por %p72, %p73
    %p75 = scmp.ne.s32.totalorder %s67, %s69
    %p76 = scmp.eq.s32.totalorder %s17, 1
    %p77 = por %p75, %p76
    %p78 = scmp.ne.s32.totalorder %s69, %s70
    %p79 = scmp.eq.s32.totalorder %s17, 0
    %p80 = por %p78, %p79
    %p81 = scmp.ne.s32.totalorder %s69, %s70
    %p82 = scmp.eq.s32.totalorder %s18, 1
    %p83 = por %p81, %p82
    %p85 = scmp.ne.s32.totalorder %s70, %s84
    %p86 = scmp.eq.s32.totalorder %s18, 0
    %p87 = por %p85, %p86
    %s89 = sadd.s32 %s88, 1
    %p92 = scmp.eq.s32.totalorder %s12, 1
    %p93 = scmp.ne.s32.totalorder %s88, %s90
    %p94 = scmp.eq.s32.totalorder %s12, 0
    %p95 = por %p93, %p94
    %p96 = scmp.ne.s32.totalorder %s88, %s90
    %p97 = scmp.eq.s32.totalorder %s17, 1
    %p98 = por %p96, %p97
    %p99 = scmp.ne.s32.totalorder %s90, %s91
    %p100 = scmp.eq.s32.totalorder %s17, 0
    %p101 = por %p99, %p100
    %p102 = scmp.ne.s32.totalorder %s90, %s91
    %p103 = scmp.eq.s32.totalorder %s18, 1
    %p104 = por %p102, %p103
    %p106 = scmp.ne.s32.totalorder %s91, %s105
    %p107 = scmp.eq.s32.totalorder %s18, 0
    %p108 = por %p106, %p107
    %s110 = sadd.s32 %s109, 1
    %p113 = scmp.eq.s32.totalorder %s12, 1
    %p114 = scmp.ne.s32.totalorder %s109, %s111
    %p115 = scmp.eq.s32.totalorder %s12, 0
    %p116 = por %p114, %p115
    %p117 = scmp.ne.s32.totalorder %s109, %s111
    %p118 = scmp.eq.s32.totalorder %s17, 1
    %p119 = por %p117, %p118
    %p120 = scmp.ne.s32.totalorder %s111, %s112
    %p121 = scmp.eq.s32.totalorder %s17, 0
    %p122 = por %p120, %p121
    %p123 = scmp.ne.s32.totalorder %s111, %s112
    %p124 = scmp.eq.s32.totalorder %s18, 1
    %p125 = por %p123, %p124
    %p127 = scmp.ne.s32.totalorder %s112, %s126
    %p128 = scmp.eq.s32.totalorder %s18, 0
    %p129 = por %p127, %p128
    %s131 = sadd.s32 %s130, 1
    %p134 = scmp.eq.s32.totalorder %s12, 1
    %p135 = scmp.ne.s32.totalorder %s130, %s132
    %p136 = scmp.eq.s32.totalorder %s12, 0
    %p137 = por %p135, %p136
    %p138 = scmp.ne.s32.totalorder %s130, %s132
    %p139 = scmp.eq.s32.totalorder %s17, 1
    %p140 = por %p138, %p139
    %p141 = scmp.ne.s32.totalorder %s132, %s133
    %p142 = scmp.eq.s32.totalorder %s17, 0
    %p143 = por %p141, %p142
    %p144 = scmp.ne.s32.totalorder %s132, %s133
    %p145 = scmp.eq.s32.totalorder %s18, 1
    %p146 = por %p144, %p145
    %p148 = scmp.ne.s32.totalorder %s133, %s147
    %p149 = scmp.eq.s32.totalorder %s18, 0
    %p150 = por %p148, %p149
    %s151 = ssub.s32 %s12, %s19
    %p152 = scmp.eq.s32.totalorder %s151, 0
    %s154 = sadd.s32 %s153, 1
    %s155 = scalar_select %p152, %s153, %s154
    %p158 = pneg %p152
    %p159 = scmp.eq.s32.totalorder %s12, 1
    %p160 = por %p158, %p159
    %p161 = scmp.ne.s32.totalorder %s153, %s156
    %p162 = scmp.eq.s32.totalorder %s12, 0
    %p163 = por %p161, %p162
    %p164 = scmp.ne.s32.totalorder %s153, %s156
    %p165 = scmp.eq.s32.totalorder %s17, 1
    %p166 = por %p164, %p165
    %p167 = scmp.ne.s32.totalorder %s156, %s157
    %p168 = scmp.eq.s32.totalorder %s17, 0
    %p169 = por %p167, %p168
    %p170 = scmp.ne.s32.totalorder %s156, %s157
    %p171 = scmp.eq.s32.totalorder %s18, 1
    %p172 = por %p170, %p171
    %p174 = scmp.ne.s32.totalorder %s157, %s173
    %p175 = scmp.eq.s32.totalorder %s18, 0
    %p176 = por %p174, %p175
    %p177 = scmp.le.s32.totalorder 1, %s12
    %p178 = scmp.lt.s32.totalorder %s12, 3
    %p179 = pnand %p177, %p178
    %p180 = pneg %p179
    // Predicated region
    $region9: #{tpu_custom_call.1} parent=5 // pred_check
      _
    $region10: #{tpu_custom_call.1} parent=5 // pred_check_branch
      %182 = sbr.rel (%p179) target = $region12
    $region11: #{tpu_custom_call.1} parent=5 // pred_region
      %s183 = ssub.s32 %s12, 1
      // Predicated region
      $region13: #{tpu_custom_call.1} parent=11 // pred_check
        %p184 = pneg %p59
      $region14: #{tpu_custom_call.1} parent=11 // pred_check_branch
        %186 = sbr.rel (%p184) target = $region16
      $region15: #{tpu_custom_call.1} parent=11 // pred_region
        _
      $region16: #{tpu_custom_call.1} parent=11 // pred_fallthru
        _
      // Predicated region
      $region17: #{tpu_custom_call.1} parent=11 // pred_check
        %p187 = pneg %p80
      $region18: #{tpu_custom_call.1} parent=11 // pred_check_branch
        %189 = sbr.rel (%p187) target = $region20
      $region19: #{tpu_custom_call.1} parent=11 // pred_region
        _
      $region20: #{tpu_custom_call.1} parent=11 // pred_fallthru
        _
      // Predicated region
      $region21: #{tpu_custom_call.1} parent=11 // pred_check
        %p190 = pneg %p101
      $region22: #{tpu_custom_call.1} parent=11 // pred_check_branch
        %192 = sbr.rel (%p190) target = $region24
      $region23: #{tpu_custom_call.1} parent=11 // pred_region
        _
      $region24: #{tpu_custom_call.1} parent=11 // pred_fallthru
        _
      // Predicated region
      $region25: #{tpu_custom_call.1} parent=11 // pred_check
        %p193 = pneg %p122
      $region26: #{tpu_custom_call.1} parent=11 // pred_check_branch
        %195 = sbr.rel (%p193) target = $region28
      $region27: #{tpu_custom_call.1} parent=11 // pred_region
        _
      $region28: #{tpu_custom_call.1} parent=11 // pred_fallthru
        _
      // Predicated region
      $region29: #{tpu_custom_call.1} parent=11 // pred_check
        %p196 = pneg %p143
      $region30: #{tpu_custom_call.1} parent=11 // pred_check_branch
        %198 = sbr.rel (%p196) target = $region32
      $region31: #{tpu_custom_call.1} parent=11 // pred_region
        _
      $region32: #{tpu_custom_call.1} parent=11 // pred_fallthru
        _
    $region12: #{tpu_custom_call.1} parent=5 // pred_fallthru
      _
    %p199 = scmp.lt.s32.totalorder %s12, 2
    // Predicated region
    $region33: #{tpu_custom_call.1} parent=5 // pred_check
      %p200 = pneg %p199
    $region34: #{tpu_custom_call.1} parent=5 // pred_check_branch
      %202 = sbr.rel (%p200) target = $region36
    $region35: #{tpu_custom_call.1} parent=5 // pred_region
      // Predicated region
      $region37: #{tpu_custom_call.1} parent=35 // pred_check
        %p203 = pneg %p32
      $region38: #{tpu_custom_call.1} parent=35 // pred_check_branch
        %205 = sbr.rel (%p203) target = $region40
      $region39: #{tpu_custom_call.1} parent=35 // pred_region
        %s206 = smul.u32 16, %s12
        %p207 = scmp.lt.s32.totalorder %s206, 31
        %s208 = scalar_select %p207, %s206, 31
        %s209 = smul.addr %s208, 8
        %s210 = scalar_lea.vmem %s0, %s209
        %s211 = smul.u32 16, %s12
      $region40: #{tpu_custom_call.1} parent=35 // pred_fallthru
        _
    $region36: #{tpu_custom_call.1} parent=5 // pred_fallthru
      _
    %p212 = scmp.le.s32.totalorder 1, %s12
    %p213 = scmp.lt.s32.totalorder %s12, 3
    %p214 = pnand %p212, %p213
    %p215 = pneg %p214
    // Predicated region
    $region41: #{tpu_custom_call.1} parent=5 // pred_check
      _
    $region42: #{tpu_custom_call.1} parent=5 // pred_check_branch
      %217 = sbr.rel (%p214) target = $region44
    $region43: #{tpu_custom_call.1} parent=5 // pred_region
      %s218 = ssub.s32 %s12, 1
      %s219 = smul.u32 16, %s17
      %p220 = scmp.lt.s32.totalorder %s219, 31
      %s221 = scalar_select %p220, %s219, 31
      %s222 = smul.addr %s221, 8
      %s223 = scalar_lea.vmem %s0, %s222
      %p224 = pneg %p38
      %p225 = pneg %p35
      %p226 = pneg %p59
      %p227 = pneg %p56
      %p228 = pneg %p80
      %p229 = pneg %p77
      %p230 = pneg %p101
      %p231 = pneg %p98
      %p232 = pneg %p122
      %p233 = pneg %p119
      %p234 = pneg %p143
      %p235 = pneg %p140
      %p236 = pneg %p169
      %p237 = pneg %p166
      %s238 = smul.u32 16, %s17
      %p239 = scmp.lt.s32.totalorder %s238, 31
      %s240 = scalar_select %p239, %s238, 31
      %s241 = smul.addr %s240, 8
      %s242 = scalar_lea.vmem %s6, %s241
      %s243 = smul.u32 16, %s17
      %p244 = scmp.lt.s32.totalorder %s243, 31
      %s245 = scalar_select %p244, %s243, 31
      %s246 = smul.addr %s245, 8
      %s247 = scalar_lea.vmem %s0, %s246
      %s248 = smul.u32 16, %s17
      %s249 = smul.u32 16, %s17
      %p250 = scmp.lt.s32.totalorder %s249, 31
      %s251 = scalar_select %p250, %s249, 31
      %s252 = smul.addr %s251, 8
      %s253 = scalar_lea.vmem %s6, %s252
      %s254 = smul.u32 16, %s17
      %v255 = vld [vmem:[%s247] sm:$0xff]
      %v256 = vld [vmem:[%s247 + $0x8] sm:$0xff]
      %v257 = vld [vmem:[%s247 + $0x10] sm:$0xff]
      %v258 = vld [vmem:[%s247 + $0x18] sm:$0xff]
      %v259 = vld [vmem:[%s247 + $0x20] sm:$0xff]
      %v260 = vld [vmem:[%s247 + $0x28] sm:$0xff]
      %v261 = vld [vmem:[%s247 + $0x30] sm:$0xff]
      %v262 = vld [vmem:[%s247 + $0x38] sm:$0xff]
      %v263 = vld [vmem:[%s247 + $0x40] sm:$0xff]
      %v264 = vld [vmem:[%s247 + $0x48] sm:$0xff]
      %v265 = vld [vmem:[%s247 + $0x50] sm:$0xff]
      %v266 = vld [vmem:[%s247 + $0x58] sm:$0xff]
      %v267 = vld [vmem:[%s247 + $0x60] sm:$0xff]
      %v268 = vld [vmem:[%s247 + $0x68] sm:$0xff]
      %v269 = vld [vmem:[%s247 + $0x70] sm:$0xff]
      %v270 = vld [vmem:[%s247 + $0x78] sm:$0xff]
      %v271 = vld [vmem:[%s5] sm:$0xff]
      %v272 = vld [vmem:[%s1] sm:$0xff]
      %v273 = vld [vmem:[%s1 + $0x8] sm:$0xff]
      %v274 = vld [vmem:[%s1 + $0x10] sm:$0xff]
      %v275 = vld [vmem:[%s1 + $0x18] sm:$0xff]
      %v276 = vld [vmem:[%s1 + $0x20] sm:$0xff]
      %v277 = vld [vmem:[%s1 + $0x28] sm:$0xff]
      %vm278 = vcmask 392192
      %v280 = vsel %vm278, %v255, 0
      %v283 = vsel %vm278, %v256, 0
      %v286 = vsel %vm278, %v257, 0
      %v289 = vsel %vm278, %v258, 0
      %v292 = vsel %vm278, %v259, 0
      %v295 = vsel %vm278, %v260, 0
      %v298 = vsel %vm278, %v261, 0
      %v301 = vsel %vm278, %v262, 0
      %v304 = vsel %vm278, %v263, 0
      %v307 = vsel %vm278, %v264, 0
      %v310 = vsel %vm278, %v265, 0
      %v313 = vsel %vm278, %v266, 0
      %v316 = vsel %vm278, %v267, 0
      %v319 = vsel %vm278, %v268, 0
      %v322 = vsel %vm278, %v269, 0
      %v325 = vsel %vm278, %v270, 0
      %327 = vmatprep.subr.mxu0 0.0
      %328 = vmatpush1.msra.mxu0 %v272
      %329 = vmatprep.subr.mxu0 0.0
      %330 = vmatpush1.msra.mxu0 %v273
      %331 = vmatprep.subr.mxu0 0.0
      %332 = vmatpush1.msra.mxu0 %v274
      %333 = vmatprep.subr.mxu0 0.0
      %334 = vmatpush1.msra.mxu0 %v275
      %335 = vmatprep.subr.mxu0 0.0
      %336 = vmatpush1.msra.mxu0 %v276
      %337 = vmatprep.subr.mxu0 0.0
      %338 = vmatpush1.msra.mxu0 %v277
      %339 = vmatprep.subr.mxu0 0.0
      %340 = vmatpush1.msra.mxu0 0.0
      %341 = vmatprep.subr.mxu0 0.0
      %342 = vmatpush1.msra.mxu0 0.0
      %343 = vmatprep.subr.mxu0 0.0
      %344 = vmatpush1.msra.mxu0 0.0
      %345 = vmatprep.subr.mxu0 0.0
      %346 = vmatpush1.msra.mxu0 0.0
      %347 = vmatprep.subr.mxu0 0.0
      %348 = vmatpush1.msra.mxu0 0.0
      %349 = vmatprep.subr.mxu0 0.0
      %350 = vmatpush1.msra.mxu0 0.0
      %351 = vmatprep.subr.mxu0 0.0
      %352 = vmatpush1.msra.mxu0 0.0
      %353 = vmatprep.subr.mxu0 0.0
      %354 = vmatpush1.msra.mxu0 0.0
      %355 = vmatprep.subr.mxu0 0.0
      %356 = vmatpush1.msra.mxu0 0.0
      %357 = vmatprep.subr.mxu0 0.0
      %358 = vmatpush1.msra.mxu0 0.0
      %359 = vmatprep.subr.mxu0 0.0
      %360 = vmatpush1.msra.mxu0 0.0
      %361 = vmatprep.subr.mxu0 0.0
      %362 = vmatpush1.msra.mxu0 0.0
      %363 = vmatprep.subr.mxu0 0.0
      %364 = vmatpush1.msra.mxu0 0.0
      %365 = vmatprep.subr.mxu0 0.0
      %366 = vmatpush1.msra.mxu0 0.0
      %367 = vmatprep.subr.mxu0 0.0
      %368 = vmatpush1.msra.mxu0 0.0
      %369 = vmatprep.subr.mxu0 0.0
      %370 = vmatpush1.msra.mxu0 0.0
      %371 = vmatprep.subr.mxu0 0.0
      %372 = vmatpush1.msra.mxu0 0.0
      %373 = vmatprep.subr.mxu0 0.0
      %374 = vmatpush1.msra.mxu0 0.0
      %375 = vmatprep.subr.mxu0 0.0
      %376 = vmatpush1.msra.mxu0 0.0
      %377 = vmatprep.subr.mxu0 0.0
      %378 = vmatpush1.msra.mxu0 0.0
      %379 = vmatprep.subr.mxu0 0.0
      %380 = vmatpush1.msra.mxu0 0.0
      %381 = vmatprep.subr.mxu0 0.0
      %382 = vmatpush1.msra.mxu0 0.0
      %383 = vmatprep.subr.mxu0 0.0
      %384 = vmatpush1.msra.mxu0 0.0
      %385 = vmatprep.subr.mxu0 0.0
      %386 = vmatpush1.msra.mxu0 0.0
      %387 = vmatprep.subr.mxu0 0.0
      %388 = vmatpush1.msra.mxu0 0.0
      %389 = vmatprep.subr.mxu0 0.0
      %390 = vmatpush1.msra.mxu0 0.0
      %391 = vmatprep.mubr.f32.mxu0 0.0
      %392 = vmatmul.mubr.f32.gmra.mrb[0].mxu0 %v280
      %v393 = vpop.f32.mrb[0].mxu0
      %v394 = vadd.f32 0.0, %v393
      %v395 = vpop.f32.mrb[0].mxu0
      %396 = vmatprep.mubr.f32.mxu0 0.0
      %397 = vmatmul.mubr.f32.gmra.mrb[0].mxu0 %v283
      %v398 = vpop.f32.mrb[0].mxu0
      %v399 = vadd.f32 0.0, %v398
      %v400 = vpop.f32.mrb[0].mxu0
      %401 = vmatprep.mubr.f32.mxu0 0.0
      %402 = vmatmul.mubr.f32.gmra.mrb[0].mxu0 %v286
      %v403 = vpop.f32.mrb[0].mxu0
      %v404 = vadd.f32 0.0, %v403
      %v405 = vpop.f32.mrb[0].mxu0
      %406 = vmatprep.mubr.f32.mxu0 0.0
      %407 = vmatmul.mubr.f32.gmra.mrb[0].mxu0 %v289
      %v408 = vpop.f32.mrb[0].mxu0
      %v409 = vadd.f32 0.0, %v408
      %v410 = vpop.f32.mrb[0].mxu0
      %411 = vmatprep.mubr.f32.mxu0 0.0
      %412 = vmatmul.mubr.f32.gmra.mrb[0].mxu0 %v292
      %v413 = vpop.f32.mrb[0].mxu0
      %v414 = vadd.f32 0.0, %v413
      %v415 = vpop.f32.mrb[0].mxu0
      %416 = vmatprep.mubr.f32.mxu0 0.0
      %417 = vmatmul.mubr.f32.gmra.mrb[0].mxu0 %v295
      %v418 = vpop.f32.mrb[0].mxu0
      %v419 = vadd.f32 0.0, %v418
      %v420 = vpop.f32.mrb[0].mxu0
      %421 = vmatprep.mubr.f32.mxu0 0.0
      %422 = vmatmul.mubr.f32.gmra.mrb[0].mxu0 %v298
      %v423 = vpop.f32.mrb[0].mxu0
      %v424 = vadd.f32 0.0, %v423
      %v425 = vpop.f32.mrb[0].mxu0
      %426 = vmatprep.mubr.f32.mxu0 0.0
      %427 = vmatmul.mubr.f32.gmra.mrb[0].mxu0 %v301
      %v428 = vpop.f32.mrb[0].mxu0
      %v429 = vadd.f32 0.0, %v428
      %v430 = vpop.f32.mrb[0].mxu0
      %431 = vmatprep.mubr.f32.mxu0 0.0
      %432 = vmatmul.mubr.f32.gmra.mrb[0].mxu0 %v304
      %v433 = vpop.f32.mrb[0].mxu0
      %v434 = vadd.f32 0.0, %v433
      %v435 = vpop.f32.mrb[0].mxu0
      %436 = vmatprep.mubr.f32.mxu0 0.0
      %437 = vmatmul.mubr.f32.gmra.mrb[0].mxu0 %v307
      %v438 = vpop.f32.mrb[0].mxu0
      %v439 = vadd.f32 0.0, %v438
      %v440 = vpop.f32.mrb[0].mxu0
      %441 = vmatprep.mubr.f32.mxu0 0.0
      %442 = vmatmul.mubr.f32.gmra.mrb[0].mxu0 %v310
      %v443 = vpop.f32.mrb[0].mxu0
      %v444 = vadd.f32 0.0, %v443
      %v445 = vpop.f32.mrb[0].mxu0
      %446 = vmatprep.mubr.f32.mxu0 0.0
      %447 = vmatmul.mubr.f32.gmra.mrb[0].mxu0 %v313
      %v448 = vpop.f32.mrb[0].mxu0
      %v449 = vadd.f32 0.0, %v448
      %v450 = vpop.f32.mrb[0].mxu0
      %451 = vmatprep.mubr.f32.mxu0 0.0
      %452 = vmatmul.mubr.f32.gmra.mrb[0].mxu0 %v316
      %v453 = vpop.f32.mrb[0].mxu0
      %v454 = vadd.f32 0.0, %v453
      %v455 = vpop.f32.mrb[0].mxu0
      %456 = vmatprep.mubr.f32.mxu0 0.0
      %457 = vmatmul.mubr.f32.gmra.mrb[0].mxu0 %v319
      %v458 = vpop.f32.mrb[0].mxu0
      %v459 = vadd.f32 0.0, %v458
      %v460 = vpop.f32.mrb[0].mxu0
      %461 = vmatprep.mubr.f32.mxu0 0.0
      %462 = vmatmul.mubr.f32.gmra.mrb[0].mxu0 %v322
      %v463 = vpop.f32.mrb[0].mxu0
      %v464 = vadd.f32 0.0, %v463
      %v465 = vpop.f32.mrb[0].mxu0
      %466 = vmatprep.mubr.f32.mxu0 0.0
      %467 = vmatmul.mubr.f32.gmra.mrb[0].mxu0 %v325
      %v468 = vpop.f32.mrb[0].mxu0
      %v469 = vadd.f32 0.0, %v468
      %v470 = vpop.f32.mrb[0].mxu0
      %471 = vdwg.mxu0
      %vm472 = vcmp.gt.f32.partialorder %v394, 0.0
      %vm473 = vcmp.gt.f32.partialorder %v399, 0.0
      %vm474 = vcmp.gt.f32.partialorder %v404, 0.0
      %vm475 = vcmp.gt.f32.partialorder %v409, 0.0
      %vm476 = vcmp.gt.f32.partialorder %v414, 0.0
      %vm477 = vcmp.gt.f32.partialorder %v419, 0.0
      %vm478 = vcmp.gt.f32.partialorder %v424, 0.0
      %vm479 = vcmp.gt.f32.partialorder %v429, 0.0
      %vm480 = vcmp.gt.f32.partialorder %v434, 0.0
      %vm481 = vcmp.gt.f32.partialorder %v439, 0.0
      %vm482 = vcmp.gt.f32.partialorder %v444, 0.0
      %vm483 = vcmp.gt.f32.partialorder %v449, 0.0
      %vm484 = vcmp.gt.f32.partialorder %v454, 0.0
      %vm485 = vcmp.gt.f32.partialorder %v459, 0.0
      %vm486 = vcmp.gt.f32.partialorder %v464, 0.0
      %vm487 = vcmp.gt.f32.partialorder %v469, 0.0
      %v488 = vmul.f32 %v394, 0.01
      %v489 = vmul.f32 %v399, 0.01
      %v490 = vmul.f32 %v404, 0.01
      %v491 = vmul.f32 %v409, 0.01
      %v492 = vmul.f32 %v414, 0.01
      %v493 = vmul.f32 %v419, 0.01
      %v494 = vmul.f32 %v424, 0.01
      %v495 = vmul.f32 %v429, 0.01
      %v496 = vmul.f32 %v434, 0.01
      %v497 = vmul.f32 %v439, 0.01
      %v498 = vmul.f32 %v444, 0.01
      %v499 = vmul.f32 %v449, 0.01
      %v500 = vmul.f32 %v454, 0.01
      %v501 = vmul.f32 %v459, 0.01
      %v502 = vmul.f32 %v464, 0.01
      %v503 = vmul.f32 %v469, 0.01
      %v504 = vsel %vm472, %v394, %v488
      %v505 = vsel %vm473, %v399, %v489
      %v506 = vsel %vm474, %v404, %v490
      %v507 = vsel %vm475, %v409, %v491
      %v508 = vsel %vm476, %v414, %v492
      %v509 = vsel %vm477, %v419, %v493
      %v510 = vsel %vm478, %v424, %v494
      %v511 = vsel %vm479, %v429, %v495
      %v512 = vsel %vm480, %v434, %v496
      %v513 = vsel %vm481, %v439, %v497
      %v514 = vsel %vm482, %v444, %v498
      %v515 = vsel %vm483, %v449, %v499
      %v516 = vsel %vm484, %v454, %v500
      %v517 = vsel %vm485, %v459, %v501
      %v518 = vsel %vm486, %v464, %v502
      %v519 = vsel %vm487, %v469, %v503
      %v520 = vld [vmem:[%s2] sm:$0xff]
      %v521 = vld [vmem:[%s2 + $0x8] sm:$0xff]
      %v522 = vld [vmem:[%s2 + $0x10] sm:$0xff]
      %v523 = vld [vmem:[%s2 + $0x18] sm:$0xff]
      %v524 = vld [vmem:[%s2 + $0x20] sm:$0xff]
      %v525 = vld [vmem:[%s2 + $0x28] sm:$0xff]
      %v526 = vlaneseq
      %v527 = vshrl.u32 %v526, 7
      %v528 = vsub.s32 0, %v527
      %v529 = vrot.slane %v271, %v528
      %v531 = vsel %vm278, %v504, 0
      %v534 = vsel %vm278, %v505, 0
      %v537 = vsel %vm278, %v506, 0
      %v540 = vsel %vm278, %v507, 0
      %v543 = vsel %vm278, %v508, 0
      %v546 = vsel %vm278, %v509, 0
      %v549 = vsel %vm278, %v510, 0
      %v552 = vsel %vm278, %v511, 0
      %v555 = vsel %vm278, %v512, 0
      %v558 = vsel %vm278, %v513, 0
      %v561 = vsel %vm278, %v514, 0
      %v564 = vsel %vm278, %v515, 0
      %v567 = vsel %vm278, %v516, 0
      %v570 = vsel %vm278, %v517, 0
      %v573 = vsel %vm278, %v518, 0
      %v576 = vsel %vm278, %v519, 0
      %578 = vmatprep.subr.mxu0 0.0
      %579 = vmatpush1.msra.mxu0 %v520
      %580 = vmatprep.subr.mxu0 0.0
      %581 = vmatpush1.msra.mxu0 %v521
      %582 = vmatprep.subr.mxu0 0.0
      %583 = vmatpush1.msra.mxu0 %v522
      %584 = vmatprep.subr.mxu0 0.0
      %585 = vmatpush1.msra.mxu0 %v523
      %586 = vmatprep.subr.mxu0 0.0
      %587 = vmatpush1.msra.mxu0 %v524
      %588 = vmatprep.subr.mxu0 0.0
      %589 = vmatpush1.msra.mxu0 %v525
      %590 = vmatprep.subr.mxu0 0.0
      %591 = vmatpush1.msra.mxu0 0.0
      %592 = vmatprep.subr.mxu0 0.0
      %593 = vmatpush1.msra.mxu0 0.0
      %594 = vmatprep.subr.mxu0 0.0
      %595 = vmatpush1.msra.mxu0 0.0
      %596 = vmatprep.subr.mxu0 0.0
      %597 = vmatpush1.msra.mxu0 0.0
      %598 = vmatprep.subr.mxu0 0.0
      %599 = vmatpush1.msra.mxu0 0.0
      %600 = vmatprep.subr.mxu0 0.0
      %601 = vmatpush1.msra.mxu0 0.0
      %602 = vmatprep.subr.mxu0 0.0
      %603 = vmatpush1.msra.mxu0 0.0
      %604 = vmatprep.subr.mxu0 0.0
      %605 = vmatpush1.msra.mxu0 0.0
      %606 = vmatprep.subr.mxu0 0.0
      %607 = vmatpush1.msra.mxu0 0.0
      %608 = vmatprep.subr.mxu0 0.0
      %609 = vmatpush1.msra.mxu0 0.0
      %610 = vmatprep.subr.mxu0 0.0
      %611 = vmatpush1.msra.mxu0 0.0
      %612 = vmatprep.subr.mxu0 0.0
      %613 = vmatpush1.msra.mxu0 0.0
      %614 = vmatprep.subr.mxu0 0.0
      %615 = vmatpush1.msra.mxu0 0.0
      %616 = vmatprep.subr.mxu0 0.0
      %617 = vmatpush1.msra.mxu0 0.0
      %618 = vmatprep.subr.mxu0 0.0
      %619 = vmatpush1.msra.mxu0 0.0
      %620 = vmatprep.subr.mxu0 0.0
      %621 = vmatpush1.msra.mxu0 0.0
      %622 = vmatprep.subr.mxu0 0.0
      %623 = vmatpush1.msra.mxu0 0.0
      %624 = vmatprep.subr.mxu0 0.0
      %625 = vmatpush1.msra.mxu0 0.0
      %626 = vmatprep.subr.mxu0 0.0
      %627 = vmatpush1.msra.mxu0 0.0
      %628 = vmatprep.subr.mxu0 0.0
      %629 = vmatpush1.msra.mxu0 0.0
      %630 = vmatprep.subr.mxu0 0.0
      %631 = vmatpush1.msra.mxu0 0.0
      %632 = vmatprep.subr.mxu0 0.0
      %633 = vmatpush1.msra.mxu0 0.0
      %634 = vmatprep.subr.mxu0 0.0
      %635 = vmatpush1.msra.mxu0 0.0
      %636 = vmatprep.subr.mxu0 0.0
      %637 = vmatpush1.msra.mxu0 0.0
      %638 = vmatprep.subr.mxu0 0.0
      %639 = vmatpush1.msra.mxu0 0.0
      %640 = vmatprep.subr.mxu0 0.0
      %641 = vmatpush1.msra.mxu0 0.0
      %642 = vmatprep.mubr.f32.mxu0 0.0
      %643 = vmatmul.mubr.f32.gmra.mrb[0].mxu0 %v531
      %v644 = vpop.f32.mrb[0].mxu0
      %v645 = vadd.f32 %v529, %v644
      %v646 = vpop.f32.mrb[0].mxu0
      %647 = vmatprep.mubr.f32.mxu0 0.0
      %648 = vmatmul.mubr.f32.gmra.mrb[0].mxu0 %v534
      %v649 = vpop.f32.mrb[0].mxu0
      %v650 = vadd.f32 %v529, %v649
      %v651 = vpop.f32.mrb[0].mxu0
      %652 = vmatprep.mubr.f32.mxu0 0.0
      %653 = vmatmul.mubr.f32.gmra.mrb[0].mxu0 %v537
      %v654 = vpop.f32.mrb[0].mxu0
      %v655 = vadd.f32 %v529, %v654
      %v656 = vpop.f32.mrb[0].mxu0
      %657 = vmatprep.mubr.f32.mxu0 0.0
      %658 = vmatmul.mubr.f32.gmra.mrb[0].mxu0 %v540
      %v659 = vpop.f32.mrb[0].mxu0
      %v660 = vadd.f32 %v529, %v659
      %v661 = vpop.f32.mrb[0].mxu0
      %662 = vmatprep.mubr.f32.mxu0 0.0
      %663 = vmatmul.mubr.f32.gmra.mrb[0].mxu0 %v543
      %v664 = vpop.f32.mrb[0].mxu0
      %v665 = vadd.f32 %v529, %v664
      %v666 = vpop.f32.mrb[0].mxu0
      %667 = vmatprep.mubr.f32.mxu0 0.0
      %668 = vmatmul.mubr.f32.gmra.mrb[0].mxu0 %v546
      %v669 = vpop.f32.mrb[0].mxu0
      %v670 = vadd.f32 %v529, %v669
      %v671 = vpop.f32.mrb[0].mxu0
      %672 = vmatprep.mubr.f32.mxu0 0.0
      %673 = vmatmul.mubr.f32.gmra.mrb[0].mxu0 %v549
      %v674 = vpop.f32.mrb[0].mxu0
      %v675 = vadd.f32 %v529, %v674
      %v676 = vpop.f32.mrb[0].mxu0
      %677 = vmatprep.mubr.f32.mxu0 0.0
      %678 = vmatmul.mubr.f32.gmra.mrb[0].mxu0 %v552
      %v679 = vpop.f32.mrb[0].mxu0
      %v680 = vadd.f32 %v529, %v679
      %v681 = vpop.f32.mrb[0].mxu0
      %682 = vmatprep.mubr.f32.mxu0 0.0
      %683 = vmatmul.mubr.f32.gmra.mrb[0].mxu0 %v555
      %v684 = vpop.f32.mrb[0].mxu0
      %v685 = vadd.f32 %v529, %v684
      %v686 = vpop.f32.mrb[0].mxu0
      %687 = vmatprep.mubr.f32.mxu0 0.0
      %688 = vmatmul.mubr.f32.gmra.mrb[0].mxu0 %v558
      %v689 = vpop.f32.mrb[0].mxu0
      %v690 = vadd.f32 %v529, %v689
      %v691 = vpop.f32.mrb[0].mxu0
      %692 = vmatprep.mubr.f32.mxu0 0.0
      %693 = vmatmul.mubr.f32.gmra.mrb[0].mxu0 %v561
      %v694 = vpop.f32.mrb[0].mxu0
      %v695 = vadd.f32 %v529, %v694
      %v696 = vpop.f32.mrb[0].mxu0
      %697 = vmatprep.mubr.f32.mxu0 0.0
      %698 = vmatmul.mubr.f32.gmra.mrb[0].mxu0 %v564
      %v699 = vpop.f32.mrb[0].mxu0
      %v700 = vadd.f32 %v529, %v699
      %v701 = vpop.f32.mrb[0].mxu0
      %702 = vmatprep.mubr.f32.mxu0 0.0
      %703 = vmatmul.mubr.f32.gmra.mrb[0].mxu0 %v567
      %v704 = vpop.f32.mrb[0].mxu0
      %v705 = vadd.f32 %v529, %v704
      %v706 = vpop.f32.mrb[0].mxu0
      %707 = vmatprep.mubr.f32.mxu0 0.0
      %708 = vmatmul.mubr.f32.gmra.mrb[0].mxu0 %v570
      %v709 = vpop.f32.mrb[0].mxu0
      %v710 = vadd.f32 %v529, %v709
      %v711 = vpop.f32.mrb[0].mxu0
      %712 = vmatprep.mubr.f32.mxu0 0.0
      %713 = vmatmul.mubr.f32.gmra.mrb[0].mxu0 %v573
      %v714 = vpop.f32.mrb[0].mxu0
      %v715 = vadd.f32 %v529, %v714
      %v716 = vpop.f32.mrb[0].mxu0
      %717 = vmatprep.mubr.f32.mxu0 0.0
      %718 = vmatmul.mubr.f32.gmra.mrb[0].mxu0 %v576
      %v719 = vpop.f32.mrb[0].mxu0
      %v720 = vadd.f32 %v529, %v719
      %v721 = vpop.f32.mrb[0].mxu0
      %722 = vdwg.mxu0
      %vm723 = vcmp.gt.f32.partialorder %v645, 0.0
      %vm724 = vcmp.gt.f32.partialorder %v650, 0.0
      %vm725 = vcmp.gt.f32.partialorder %v655, 0.0
      %vm726 = vcmp.gt.f32.partialorder %v660, 0.0
      %vm727 = vcmp.gt.f32.partialorder %v665, 0.0
      %vm728 = vcmp.gt.f32.partialorder %v670, 0.0
      %vm729 = vcmp.gt.f32.partialorder %v675, 0.0
      %vm730 = vcmp.gt.f32.partialorder %v680, 0.0
      %vm731 = vcmp.gt.f32.partialorder %v685, 0.0
      %vm732 = vcmp.gt.f32.partialorder %v690, 0.0
      %vm733 = vcmp.gt.f32.partialorder %v695, 0.0
      %vm734 = vcmp.gt.f32.partialorder %v700, 0.0
      %vm735 = vcmp.gt.f32.partialorder %v705, 0.0
      %vm736 = vcmp.gt.f32.partialorder %v710, 0.0
      %vm737 = vcmp.gt.f32.partialorder %v715, 0.0
      %vm738 = vcmp.gt.f32.partialorder %v720, 0.0
      %v739 = vmul.f32 %v645, 0.01
      %v740 = vmul.f32 %v650, 0.01
      %v741 = vmul.f32 %v655, 0.01
      %v742 = vmul.f32 %v660, 0.01
      %v743 = vmul.f32 %v665, 0.01
      %v744 = vmul.f32 %v670, 0.01
      %v745 = vmul.f32 %v675, 0.01
      %v746 = vmul.f32 %v680, 0.01
      %v747 = vmul.f32 %v685, 0.01
      %v748 = vmul.f32 %v690, 0.01
      %v749 = vmul.f32 %v695, 0.01
      %v750 = vmul.f32 %v700, 0.01
      %v751 = vmul.f32 %v705, 0.01
      %v752 = vmul.f32 %v710, 0.01
      %v753 = vmul.f32 %v715, 0.01
      %v754 = vmul.f32 %v720, 0.01
      %v755 = vsel %vm723, %v645, %v739
      %v756 = vsel %vm724, %v650, %v740
      %v757 = vsel %vm725, %v655, %v741
      %v758 = vsel %vm726, %v660, %v742
      %v759 = vsel %vm727, %v665, %v743
      %v760 = vsel %vm728, %v670, %v744
      %v761 = vsel %vm729, %v675, %v745
      %v762 = vsel %vm730, %v680, %v746
      %v763 = vsel %vm731, %v685, %v747
      %v764 = vsel %vm732, %v690, %v748
      %v765 = vsel %vm733, %v695, %v749
      %v766 = vsel %vm734, %v700, %v750
      %v767 = vsel %vm735, %v705, %v751
      %v768 = vsel %vm736, %v710, %v752
      %v769 = vsel %vm737, %v715, %v753
      %v770 = vsel %vm738, %v720, %v754
      %v771 = vld [vmem:[%s3] sm:$0xff]
      %v772 = vld [vmem:[%s3 + $0x8] sm:$0xff]
      %v773 = vlaneseq
      %v774 = vshrl.u32 %v773, 7
      %v775 = vsub.s32 1, %v774
      %v776 = vrot.slane %v271, %v775
      %vm777 = vcmask 130048
      %v779 = vsel %vm777, %v755, 0
      %v782 = vsel %vm777, %v756, 0
      %v785 = vsel %vm777, %v757, 0
      %v788 = vsel %vm777, %v758, 0
      %v791 = vsel %vm777, %v759, 0
      %v794 = vsel %vm777, %v760, 0
      %v797 = vsel %vm777, %v761, 0
      %v800 = vsel %vm777, %v762, 0
      %v803 = vsel %vm777, %v763, 0
      %v806 = vsel %vm777, %v764, 0
      %v809 = vsel %vm777, %v765, 0
      %v812 = vsel %vm777, %v766, 0
      %v815 = vsel %vm777, %v767, 0
      %v818 = vsel %vm777, %v768, 0
      %v821 = vsel %vm777, %v769, 0
      %v824 = vsel %vm777, %v770, 0
      %826 = vmatprep.subr.mxu0 0.0
      %827 = vmatpush1.msra.mxu0 %v771
      %828 = vmatprep.subr.mxu0 0.0
      %829 = vmatpush1.msra.mxu0 %v772
      %830 = vmatprep.subr.mxu0 0.0
      %831 = vmatpush1.msra.mxu0 0.0
      %832 = vmatprep.subr.mxu0 0.0
      %833 = vmatpush1.msra.mxu0 0.0
      %834 = vmatprep.subr.mxu0 0.0
      %835 = vmatpush1.msra.mxu0 0.0
      %836 = vmatprep.subr.mxu0 0.0
      %837 = vmatpush1.msra.mxu0 0.0
      %838 = vmatprep.subr.mxu0 0.0
      %839 = vmatpush1.msra.mxu0 0.0
      %840 = vmatprep.subr.mxu0 0.0
      %841 = vmatpush1.msra.mxu0 0.0
      %842 = vmatprep.subr.mxu0 0.0
      %843 = vmatpush1.msra.mxu0 0.0
      %844 = vmatprep.subr.mxu0 0.0
      %845 = vmatpush1.msra.mxu0 0.0
      %846 = vmatprep.subr.mxu0 0.0
      %847 = vmatpush1.msra.mxu0 0.0
      %848 = vmatprep.subr.mxu0 0.0
      %849 = vmatpush1.msra.mxu0 0.0
      %850 = vmatprep.subr.mxu0 0.0
      %851 = vmatpush1.msra.mxu0 0.0
      %852 = vmatprep.subr.mxu0 0.0
      %853 = vmatpush1.msra.mxu0 0.0
      %854 = vmatprep.subr.mxu0 0.0
      %855 = vmatpush1.msra.mxu0 0.0
      %856 = vmatprep.subr.mxu0 0.0
      %857 = vmatpush1.msra.mxu0 0.0
      %858 = vmatprep.subr.mxu0 0.0
      %859 = vmatpush1.msra.mxu0 0.0
      %860 = vmatprep.subr.mxu0 0.0
      %861 = vmatpush1.msra.mxu0 0.0
      %862 = vmatprep.subr.mxu0 0.0
      %863 = vmatpush1.msra.mxu0 0.0
      %864 = vmatprep.subr.mxu0 0.0
      %865 = vmatpush1.msra.mxu0 0.0
      %866 = vmatprep.subr.mxu0 0.0
      %867 = vmatpush1.msra.mxu0 0.0
      %868 = vmatprep.subr.mxu0 0.0
      %869 = vmatpush1.msra.mxu0 0.0
      %870 = vmatprep.subr.mxu0 0.0
      %871 = vmatpush1.msra.mxu0 0.0
      %872 = vmatprep.subr.mxu0 0.0
      %873 = vmatpush1.msra.mxu0 0.0
      %874 = vmatprep.subr.mxu0 0.0
      %875 = vmatpush1.msra.mxu0 0.0
      %876 = vmatprep.subr.mxu0 0.0
      %877 = vmatpush1.msra.mxu0 0.0
      %878 = vmatprep.subr.mxu0 0.0
      %879 = vmatpush1.msra.mxu0 0.0
      %880 = vmatprep.subr.mxu0 0.0
      %881 = vmatpush1.msra.mxu0 0.0
      %882 = vmatprep.subr.mxu0 0.0
      %883 = vmatpush1.msra.mxu0 0.0
      %884 = vmatprep.subr.mxu0 0.0
      %885 = vmatpush1.msra.mxu0 0.0
      %886 = vmatprep.subr.mxu0 0.0
      %887 = vmatpush1.msra.mxu0 0.0
      %888 = vmatprep.subr.mxu0 0.0
      %889 = vmatpush1.msra.mxu0 0.0
      %890 = vmatprep.mubr.f32.mxu0 0.0
      %891 = vmatmul.mubr.f32.gmra.mrb[0].mxu0 %v779
      %v892 = vpop.f32.mrb[0].mxu0
      %v893 = vadd.f32 %v776, %v892
      %v894 = vpop.f32.mrb[0].mxu0
      %895 = vmatprep.mubr.f32.mxu0 0.0
      %896 = vmatmul.mubr.f32.gmra.mrb[0].mxu0 %v782
      %v897 = vpop.f32.mrb[0].mxu0
      %v898 = vadd.f32 %v776, %v897
      %v899 = vpop.f32.mrb[0].mxu0
      %900 = vmatprep.mubr.f32.mxu0 0.0
      %901 = vmatmul.mubr.f32.gmra.mrb[0].mxu0 %v785
      %v902 = vpop.f32.mrb[0].mxu0
      %v903 = vadd.f32 %v776, %v902
      %v904 = vpop.f32.mrb[0].mxu0
      %905 = vmatprep.mubr.f32.mxu0 0.0
      %906 = vmatmul.mubr.f32.gmra.mrb[0].mxu0 %v788
      %v907 = vpop.f32.mrb[0].mxu0
      %v908 = vadd.f32 %v776, %v907
      %v909 = vpop.f32.mrb[0].mxu0
      %910 = vmatprep.mubr.f32.mxu0 0.0
      %911 = vmatmul.mubr.f32.gmra.mrb[0].mxu0 %v791
      %v912 = vpop.f32.mrb[0].mxu0
      %v913 = vadd.f32 %v776, %v912
      %v914 = vpop.f32.mrb[0].mxu0
      %915 = vmatprep.mubr.f32.mxu0 0.0
      %916 = vmatmul.mubr.f32.gmra.mrb[0].mxu0 %v794
      %v917 = vpop.f32.mrb[0].mxu0
      %v918 = vadd.f32 %v776, %v917
      %v919 = vpop.f32.mrb[0].mxu0
      %920 = vmatprep.mubr.f32.mxu0 0.0
      %921 = vmatmul.mubr.f32.gmra.mrb[0].mxu0 %v797
      %v922 = vpop.f32.mrb[0].mxu0
      %v923 = vadd.f32 %v776, %v922
      %v924 = vpop.f32.mrb[0].mxu0
      %925 = vmatprep.mubr.f32.mxu0 0.0
      %926 = vmatmul.mubr.f32.gmra.mrb[0].mxu0 %v800
      %v927 = vpop.f32.mrb[0].mxu0
      %v928 = vadd.f32 %v776, %v927
      %v929 = vpop.f32.mrb[0].mxu0
      %930 = vmatprep.mubr.f32.mxu0 0.0
      %931 = vmatmul.mubr.f32.gmra.mrb[0].mxu0 %v803
      %v932 = vpop.f32.mrb[0].mxu0
      %v933 = vadd.f32 %v776, %v932
      %v934 = vpop.f32.mrb[0].mxu0
      %935 = vmatprep.mubr.f32.mxu0 0.0
      %936 = vmatmul.mubr.f32.gmra.mrb[0].mxu0 %v806
      %v937 = vpop.f32.mrb[0].mxu0
      %v938 = vadd.f32 %v776, %v937
      %v939 = vpop.f32.mrb[0].mxu0
      %940 = vmatprep.mubr.f32.mxu0 0.0
      %941 = vmatmul.mubr.f32.gmra.mrb[0].mxu0 %v809
      %v942 = vpop.f32.mrb[0].mxu0
      %v943 = vadd.f32 %v776, %v942
      %v944 = vpop.f32.mrb[0].mxu0
      %945 = vmatprep.mubr.f32.mxu0 0.0
      %946 = vmatmul.mubr.f32.gmra.mrb[0].mxu0 %v812
      %v947 = vpop.f32.mrb[0].mxu0
      %v948 = vadd.f32 %v776, %v947
      %v949 = vpop.f32.mrb[0].mxu0
      %950 = vmatprep.mubr.f32.mxu0 0.0
      %951 = vmatmul.mubr.f32.gmra.mrb[0].mxu0 %v815
      %v952 = vpop.f32.mrb[0].mxu0
      %v953 = vadd.f32 %v776, %v952
      %v954 = vpop.f32.mrb[0].mxu0
      %955 = vmatprep.mubr.f32.mxu0 0.0
      %956 = vmatmul.mubr.f32.gmra.mrb[0].mxu0 %v818
      %v957 = vpop.f32.mrb[0].mxu0
      %v958 = vadd.f32 %v776, %v957
      %v959 = vpop.f32.mrb[0].mxu0
      %960 = vmatprep.mubr.f32.mxu0 0.0
      %961 = vmatmul.mubr.f32.gmra.mrb[0].mxu0 %v821
      %v962 = vpop.f32.mrb[0].mxu0
      %v963 = vadd.f32 %v776, %v962
      %v964 = vpop.f32.mrb[0].mxu0
      %965 = vmatprep.mubr.f32.mxu0 0.0
      %966 = vmatmul.mubr.f32.gmra.mrb[0].mxu0 %v824
      %v967 = vpop.f32.mrb[0].mxu0
      %v968 = vadd.f32 %v776, %v967
      %v969 = vpop.f32.mrb[0].mxu0
      %970 = vdwg.mxu0
      %vm971 = vcmp.gt.f32.partialorder %v893, 0.0
      %vm972 = vcmp.gt.f32.partialorder %v898, 0.0
      %vm973 = vcmp.gt.f32.partialorder %v903, 0.0
      %vm974 = vcmp.gt.f32.partialorder %v908, 0.0
      %vm975 = vcmp.gt.f32.partialorder %v913, 0.0
      %vm976 = vcmp.gt.f32.partialorder %v918, 0.0
      %vm977 = vcmp.gt.f32.partialorder %v923, 0.0
      %vm978 = vcmp.gt.f32.partialorder %v928, 0.0
      %vm979 = vcmp.gt.f32.partialorder %v933, 0.0
      %vm980 = vcmp.gt.f32.partialorder %v938, 0.0
      %vm981 = vcmp.gt.f32.partialorder %v943, 0.0
      %vm982 = vcmp.gt.f32.partialorder %v948, 0.0
      %vm983 = vcmp.gt.f32.partialorder %v953, 0.0
      %vm984 = vcmp.gt.f32.partialorder %v958, 0.0
      %vm985 = vcmp.gt.f32.partialorder %v963, 0.0
      %vm986 = vcmp.gt.f32.partialorder %v968, 0.0
      %v987 = vmul.f32 %v893, 0.01
      %v988 = vmul.f32 %v898, 0.01
      %v989 = vmul.f32 %v903, 0.01
      %v990 = vmul.f32 %v908, 0.01
      %v991 = vmul.f32 %v913, 0.01
      %v992 = vmul.f32 %v918, 0.01
      %v993 = vmul.f32 %v923, 0.01
      %v994 = vmul.f32 %v928, 0.01
      %v995 = vmul.f32 %v933, 0.01
      %v996 = vmul.f32 %v938, 0.01
      %v997 = vmul.f32 %v943, 0.01
      %v998 = vmul.f32 %v948, 0.01
      %v999 = vmul.f32 %v953, 0.01
      %v1000 = vmul.f32 %v958, 0.01
      %v1001 = vmul.f32 %v963, 0.01
      %v1002 = vmul.f32 %v968, 0.01
      %v1003 = vsel %vm971, %v893, %v987
      %v1004 = vsel %vm972, %v898, %v988
      %v1005 = vsel %vm973, %v903, %v989
      %v1006 = vsel %vm974, %v908, %v990
      %v1007 = vsel %vm975, %v913, %v991
      %v1008 = vsel %vm976, %v918, %v992
      %v1009 = vsel %vm977, %v923, %v993
      %v1010 = vsel %vm978, %v928, %v994
      %v1011 = vsel %vm979, %v933, %v995
      %v1012 = vsel %vm980, %v938, %v996
      %v1013 = vsel %vm981, %v943, %v997
      %v1014 = vsel %vm982, %v948, %v998
      %v1015 = vsel %vm983, %v953, %v999
      %v1016 = vsel %vm984, %v958, %v1000
      %v1017 = vsel %vm985, %v963, %v1001
      %v1018 = vsel %vm986, %v968, %v1002
      %v1019 = vld [vmem:[%s4] sm:$0xff]
      %v1020 = vld [vmem:[%s4 + $0x8] sm:$0xff]
      %v1021 = vld [vmem:[%s4 + $0x10] sm:$0xff]
      %v1022 = vld [vmem:[%s4 + $0x18] sm:$0xff]
      %v1023 = vld [vmem:[%s4 + $0x20] sm:$0xff]
      %v1024 = vld [vmem:[%s4 + $0x28] sm:$0xff]
      %v1025 = vlaneseq
      %v1026 = vshrl.u32 %v1025, 7
      %v1027 = vsub.s32 2, %v1026
      %v1028 = vrot.slane %v271, %v1027
      %v1030 = vsel %vm278, %v1003, 0
      %v1033 = vsel %vm278, %v1004, 0
      %v1036 = vsel %vm278, %v1005, 0
      %v1039 = vsel %vm278, %v1006, 0
      %v1042 = vsel %vm278, %v1007, 0
      %v1045 = vsel %vm278, %v1008, 0
      %v1048 = vsel %vm278, %v1009, 0
      %v1051 = vsel %vm278, %v1010, 0
      %v1054 = vsel %vm278, %v1011, 0
      %v1057 = vsel %vm278, %v1012, 0
      %v1060 = vsel %vm278, %v1013, 0
      %v1063 = vsel %vm278, %v1014, 0
      %v1066 = vsel %vm278, %v1015, 0
      %v1069 = vsel %vm278, %v1016, 0
      %v1072 = vsel %vm278, %v1017, 0
      %v1075 = vsel %vm278, %v1018, 0
      %1077 = vmatprep.subr.mxu0 0.0
      %1078 = vmatpush1.msra.mxu0 %v1019
      %1079 = vmatprep.subr.mxu0 0.0
      %1080 = vmatpush1.msra.mxu0 %v1020
      %1081 = vmatprep.subr.mxu0 0.0
      %1082 = vmatpush1.msra.mxu0 %v1021
      %1083 = vmatprep.subr.mxu0 0.0
      %1084 = vmatpush1.msra.mxu0 %v1022
      %1085 = vmatprep.subr.mxu0 0.0
      %1086 = vmatpush1.msra.mxu0 %v1023
      %1087 = vmatprep.subr.mxu0 0.0
      %1088 = vmatpush1.msra.mxu0 %v1024
      %1089 = vmatprep.subr.mxu0 0.0
      %1090 = vmatpush1.msra.mxu0 0.0
      %1091 = vmatprep.subr.mxu0 0.0
      %1092 = vmatpush1.msra.mxu0 0.0
      %1093 = vmatprep.subr.mxu0 0.0
      %1094 = vmatpush1.msra.mxu0 0.0
      %1095 = vmatprep.subr.mxu0 0.0
      %1096 = vmatpush1.msra.mxu0 0.0
      %1097 = vmatprep.subr.mxu0 0.0
      %1098 = vmatpush1.msra.mxu0 0.0
      %1099 = vmatprep.subr.mxu0 0.0
      %1100 = vmatpush1.msra.mxu0 0.0
      %1101 = vmatprep.subr.mxu0 0.0
      %1102 = vmatpush1.msra.mxu0 0.0
      %1103 = vmatprep.subr.mxu0 0.0
      %1104 = vmatpush1.msra.mxu0 0.0
      %1105 = vmatprep.subr.mxu0 0.0
      %1106 = vmatpush1.msra.mxu0 0.0
      %1107 = vmatprep.subr.mxu0 0.0
      %1108 = vmatpush1.msra.mxu0 0.0
      %1109 = vmatprep.subr.mxu0 0.0
      %1110 = vmatpush1.msra.mxu0 0.0
      %1111 = vmatprep.subr.mxu0 0.0
      %1112 = vmatpush1.msra.mxu0 0.0
      %1113 = vmatprep.subr.mxu0 0.0
      %1114 = vmatpush1.msra.mxu0 0.0
      %1115 = vmatprep.subr.mxu0 0.0
      %1116 = vmatpush1.msra.mxu0 0.0
      %1117 = vmatprep.subr.mxu0 0.0
      %1118 = vmatpush1.msra.mxu0 0.0
      %1119 = vmatprep.subr.mxu0 0.0
      %1120 = vmatpush1.msra.mxu0 0.0
      %1121 = vmatprep.subr.mxu0 0.0
      %1122 = vmatpush1.msra.mxu0 0.0
      %1123 = vmatprep.subr.mxu0 0.0
      %1124 = vmatpush1.msra.mxu0 0.0
      %1125 = vmatprep.subr.mxu0 0.0
      %1126 = vmatpush1.msra.mxu0 0.0
      %1127 = vmatprep.subr.mxu0 0.0
      %1128 = vmatpush1.msra.mxu0 0.0
      %1129 = vmatprep.subr.mxu0 0.0
      %1130 = vmatpush1.msra.mxu0 0.0
      %1131 = vmatprep.subr.mxu0 0.0
      %1132 = vmatpush1.msra.mxu0 0.0
      %1133 = vmatprep.subr.mxu0 0.0
      %1134 = vmatpush1.msra.mxu0 0.0
      %1135 = vmatprep.subr.mxu0 0.0
      %1136 = vmatpush1.msra.mxu0 0.0
      %1137 = vmatprep.subr.mxu0 0.0
      %1138 = vmatpush1.msra.mxu0 0.0
      %1139 = vmatprep.subr.mxu0 0.0
      %1140 = vmatpush1.msra.mxu0 0.0
      %1141 = vmatprep.mubr.f32.mxu0 0.0
      %1142 = vmatmul.mubr.f32.gmra.mrb[0].mxu0 %v1030
      %v1143 = vpop.f32.mrb[0].mxu0
      %v1144 = vadd.f32 %v1028, %v1143
      %v1145 = vpop.f32.mrb[0].mxu0
      %1146 = vmatprep.mubr.f32.mxu0 0.0
      %1147 = vmatmul.mubr.f32.gmra.mrb[0].mxu0 %v1033
      %v1148 = vpop.f32.mrb[0].mxu0
      %v1149 = vadd.f32 %v1028, %v1148
      %v1150 = vpop.f32.mrb[0].mxu0
      %1151 = vmatprep.mubr.f32.mxu0 0.0
      %1152 = vmatmul.mubr.f32.gmra.mrb[0].mxu0 %v1036
      %v1153 = vpop.f32.mrb[0].mxu0
      %v1154 = vadd.f32 %v1028, %v1153
      %v1155 = vpop.f32.mrb[0].mxu0
      %1156 = vmatprep.mubr.f32.mxu0 0.0
      %1157 = vmatmul.mubr.f32.gmra.mrb[0].mxu0 %v1039
      %v1158 = vpop.f32.mrb[0].mxu0
      %v1159 = vadd.f32 %v1028, %v1158
      %v1160 = vpop.f32.mrb[0].mxu0
      %1161 = vmatprep.mubr.f32.mxu0 0.0
      %1162 = vmatmul.mubr.f32.gmra.mrb[0].mxu0 %v1042
      %v1163 = vpop.f32.mrb[0].mxu0
      %v1164 = vadd.f32 %v1028, %v1163
      %v1165 = vpop.f32.mrb[0].mxu0
      %1166 = vmatprep.mubr.f32.mxu0 0.0
      %1167 = vmatmul.mubr.f32.gmra.mrb[0].mxu0 %v1045
      %v1168 = vpop.f32.mrb[0].mxu0
      %v1169 = vadd.f32 %v1028, %v1168
      %v1170 = vpop.f32.mrb[0].mxu0
      %1171 = vmatprep.mubr.f32.mxu0 0.0
      %1172 = vmatmul.mubr.f32.gmra.mrb[0].mxu0 %v1048
      %v1173 = vpop.f32.mrb[0].mxu0
      %v1174 = vadd.f32 %v1028, %v1173
      %v1175 = vpop.f32.mrb[0].mxu0
      %1176 = vmatprep.mubr.f32.mxu0 0.0
      %1177 = vmatmul.mubr.f32.gmra.mrb[0].mxu0 %v1051
      %v1178 = vpop.f32.mrb[0].mxu0
      %v1179 = vadd.f32 %v1028, %v1178
      %v1180 = vpop.f32.mrb[0].mxu0
      %1181 = vmatprep.mubr.f32.mxu0 0.0
      %1182 = vmatmul.mubr.f32.gmra.mrb[0].mxu0 %v1054
      %v1183 = vpop.f32.mrb[0].mxu0
      %v1184 = vadd.f32 %v1028, %v1183
      %v1185 = vpop.f32.mrb[0].mxu0
      %1186 = vmatprep.mubr.f32.mxu0 0.0
      %1187 = vmatmul.mubr.f32.gmra.mrb[0].mxu0 %v1057
      %v1188 = vpop.f32.mrb[0].mxu0
      %v1189 = vadd.f32 %v1028, %v1188
      %v1190 = vpop.f32.mrb[0].mxu0
      %1191 = vmatprep.mubr.f32.mxu0 0.0
      %1192 = vmatmul.mubr.f32.gmra.mrb[0].mxu0 %v1060
      %v1193 = vpop.f32.mrb[0].mxu0
      %v1194 = vadd.f32 %v1028, %v1193
      %v1195 = vpop.f32.mrb[0].mxu0
      %1196 = vmatprep.mubr.f32.mxu0 0.0
      %1197 = vmatmul.mubr.f32.gmra.mrb[0].mxu0 %v1063
      %v1198 = vpop.f32.mrb[0].mxu0
      %v1199 = vadd.f32 %v1028, %v1198
      %v1200 = vpop.f32.mrb[0].mxu0
      %1201 = vmatprep.mubr.f32.mxu0 0.0
      %1202 = vmatmul.mubr.f32.gmra.mrb[0].mxu0 %v1066
      %v1203 = vpop.f32.mrb[0].mxu0
      %v1204 = vadd.f32 %v1028, %v1203
      %v1205 = vpop.f32.mrb[0].mxu0
      %1206 = vmatprep.mubr.f32.mxu0 0.0
      %1207 = vmatmul.mubr.f32.gmra.mrb[0].mxu0 %v1069
      %v1208 = vpop.f32.mrb[0].mxu0
      %v1209 = vadd.f32 %v1028, %v1208
      %v1210 = vpop.f32.mrb[0].mxu0
      %1211 = vmatprep.mubr.f32.mxu0 0.0
      %1212 = vmatmul.mubr.f32.gmra.mrb[0].mxu0 %v1072
      %v1213 = vpop.f32.mrb[0].mxu0
      %v1214 = vadd.f32 %v1028, %v1213
      %v1215 = vpop.f32.mrb[0].mxu0
      %1216 = vmatprep.mubr.f32.mxu0 0.0
      %1217 = vmatmul.mubr.f32.gmra.mrb[0].mxu0 %v1075
      %v1218 = vpop.f32.mrb[0].mxu0
      %v1219 = vadd.f32 %v1028, %v1218
      %v1220 = vpop.f32.mrb[0].mxu0
      %1221 = vdwg.mxu0
      %1222 = vst.msk [vmem:[%s253] sm:$0xff] %vm278, %v1144
      %1223 = vst.msk [vmem:[%s253 + $0x8] sm:$0xff] %vm278, %v1149
      %1224 = vst.msk [vmem:[%s253 + $0x10] sm:$0xff] %vm278, %v1154
      %1225 = vst.msk [vmem:[%s253 + $0x18] sm:$0xff] %vm278, %v1159
      %1226 = vst.msk [vmem:[%s253 + $0x20] sm:$0xff] %vm278, %v1164
      %1227 = vst.msk [vmem:[%s253 + $0x28] sm:$0xff] %vm278, %v1169
      %1228 = vst.msk [vmem:[%s253 + $0x30] sm:$0xff] %vm278, %v1174
      %1229 = vst.msk [vmem:[%s253 + $0x38] sm:$0xff] %vm278, %v1179
      %1230 = vst.msk [vmem:[%s253 + $0x40] sm:$0xff] %vm278, %v1184
      %1231 = vst.msk [vmem:[%s253 + $0x48] sm:$0xff] %vm278, %v1189
      %1232 = vst.msk [vmem:[%s253 + $0x50] sm:$0xff] %vm278, %v1194
      %1233 = vst.msk [vmem:[%s253 + $0x58] sm:$0xff] %vm278, %v1199
      %1234 = vst.msk [vmem:[%s253 + $0x60] sm:$0xff] %vm278, %v1204
      %1235 = vst.msk [vmem:[%s253 + $0x68] sm:$0xff] %vm278, %v1209
      %1236 = vst.msk [vmem:[%s253 + $0x70] sm:$0xff] %vm278, %v1214
      %1237 = vst.msk [vmem:[%s253 + $0x78] sm:$0xff] %vm278, %v1219
      %s1238 = smul.u32 16, %s17
      %p1239 = scmp.lt.s32.totalorder %s1238, 31
      %s1240 = scalar_select %p1239, %s1238, 31
      %s1241 = smul.addr %s1240, 8
      %s1242 = scalar_lea.vmem %s6, %s1241
      // Predicated region
      $region45: #{tpu_custom_call.1} parent=43 // pred_check
        %p1243 = pneg %p166
      $region46: #{tpu_custom_call.1} parent=43 // pred_check_branch
        %1245 = sbr.rel (%p1243) target = $region48
      $region47: #{tpu_custom_call.1} parent=43 // pred_region
        %s1246 = smul.u32 16, %s17
      $region48: #{tpu_custom_call.1} parent=43 // pred_fallthru
        _
    $region44: #{tpu_custom_call.1} parent=5 // pred_fallthru
      _
    %p1247 = scmp.le.s32.totalorder 2, %s12
    // Predicated region
    $region49: #{tpu_custom_call.1} parent=5 // pred_check
      %p1248 = pneg %p1247
    $region50: #{tpu_custom_call.1} parent=5 // pred_check_branch
      %1250 = sbr.rel (%p1248) target = $region52
    $region51: #{tpu_custom_call.1} parent=5 // pred_region
      %s1251 = ssub.s32 %s12, 2
      // Predicated region
      $region53: #{tpu_custom_call.1} parent=51 // pred_check
        %p1252 = pneg %p172
      $region54: #{tpu_custom_call.1} parent=51 // pred_check_branch
        %1254 = sbr.rel (%p1252) target = $region56
      $region55: #{tpu_custom_call.1} parent=51 // pred_region
        %s1255 = smul.u32 16, %s18
        %p1256 = scmp.lt.s32.totalorder %s1255, 31
        %s1257 = scalar_select %p1256, %s1255, 31
        %s1258 = smul.addr %s1257, 8
        %s1259 = scalar_lea.vmem %s6, %s1258
      $region56: #{tpu_custom_call.1} parent=51 // pred_fallthru
        _
    $region52: #{tpu_custom_call.1} parent=5 // pred_fallthru
      _
  $region6: #{tpu_custom_call.1} parent=0 // loop_footer
    %s16 = sadd.s32 1, %s12
  $region7: #{tpu_custom_call.1} parent=0 // loop_footer_branch
    %11 = sbr.rel target = $region3
  $region8: #{tpu_custom_call.1} parent=0 // loop_exit
    _

</llo_original>
